<compile_context>
chip_gen: v5e
topology: v5e:2x2
jax: 0.10.0
libtpu: 0.0.40
codegen_flags: <defaults>
</compile_context>

<pallas_src>
import functools

import jax
import jax.numpy as jnp
from jax.experimental import pallas as pl
from jax.experimental.pallas import tpu as pltpu


def soft_attention_kernel(x_ref, w_ref, o_ref):
    # x_ref: (TILE_B, D_in)   w_ref: (D_in, S)   o_ref: (TILE_B, S)
    logits = jnp.dot(x_ref[...], w_ref[...],
                     preferred_element_type=jnp.float32)      # (TILE_B, S), f32
    # Row softmax (dim=1), f32 throughout; exact divide (kernel is HBM-bound,
    # so exactness is free and keeps row sums == 1 to f32 precision).
    m = jnp.max(logits, axis=1, keepdims=True)
    e = jnp.exp(logits - m)
    denom = jnp.sum(e, axis=1, keepdims=True)
    o_ref[...] = (e / denom).astype(o_ref.dtype)


def combine_weights(w_attn, w_v):
    """Fuse the two bias-free Linear layers into one weight matrix (done once).

    w_attn: (output_size, D_in)            (PyTorch nn.Linear layout)
    w_v:    (sequence_length, output_size)
    returns W_combined: (D_in, sequence_length) such that
        softmax(x @ W_combined, axis=1) == softmax((x @ w_attn.T) @ w_v.T, axis=1)
    """
    return jnp.dot(w_attn.T, w_v.T, preferred_element_type=jnp.float32)  # (D_in, S)


@functools.partial(jax.jit, static_argnames=("tile_b",))
def soft_attention(attn_input, w_combined, *, tile_b=4096):
    """attn_input: (B, D_in) with D_in = seq*input_size_dec + output_size
       w_combined: (D_in, S) from combine_weights()."""
    B, D_in = attn_input.shape
    S = w_combined.shape[1]

    if B <= tile_b:
        # Small problem: single full-array VMEM block, no grid.
        # (For truly tiny B, plain jnp would be cheaper than a kernel launch;
        #  kept on the Pallas path here so the kernel is exercised.)
        return pl.pallas_call(
            soft_attention_kernel,
            out_shape=jax.ShapeDtypeStruct((B, S), attn_input.dtype),
            in_specs=[
                pl.BlockSpec(memory_space=pltpu.MemorySpace.VMEM),
                pl.BlockSpec(memory_space=pltpu.MemorySpace.VMEM),
            ],
            out_specs=pl.BlockSpec(memory_space=pltpu.MemorySpace.VMEM),
        )(attn_input, w_combined)

    # Large batch: grid over B, double-buffered HBM->VMEM pipelining; the tiny
    # weight block is resident (constant index_map).  Batch axis is "parallel"
    # so it shards across TensorCores on v7x megacore.
    grid = (pl.cdiv(B, tile_b),)
    return pl.pallas_call(
        soft_attention_kernel,
        out_shape=jax.ShapeDtypeStruct((B, S), attn_input.dtype),
        grid=grid,
        in_specs=[
            pl.BlockSpec((tile_b, D_in), lambda i: (i, 0)),   # streamed x tiles
            pl.BlockSpec((D_in, S), lambda i: (0, 0)),        # resident weight (~2 KiB)
        ],
        out_specs=pl.BlockSpec((tile_b, S), lambda i: (i, 0)),
        compiler_params=pltpu.CompilerParams(
            dimension_semantics=("parallel",),
        ),
    )(attn_input, w_combined)


def reference_soft_attention(attn_input, w_attn, w_v):
    energy = attn_input @ w_attn.T
    attn_weights = energy @ w_v.T
    return jax.nn.softmax(attn_weights, axis=1)


if __name__ == "__main__":
    # Module hyper-parameters (small, consistent with the forward pass)
    sequence_length = 8
    input_size_dec = 4
    output_size = 32
    batch = 2
    d_in = sequence_length * input_size_dec + output_size  # 64

    key = jax.random.PRNGKey(0)
    k_x, k_attn, k_v, k_xl = jax.random.split(key, 4)

    # Deterministic parameter init (uniform bounds like nn.Linear default)
    bound_attn = 1.0 / (d_in ** 0.5)
    bound_v = 1.0 / (output_size ** 0.5)
    w_attn = jax.random.uniform(
        k_attn, (output_size, d_in), jnp.float32, -bound_attn, bound_attn)
    w_v = jax.random.uniform(
        k_v, (sequence_length, output_size), jnp.float32, -bound_v, bound_v)

    # One-time weight fusion (replaces per-call transposes + second matmul).
    w_combined = jax.block_until_ready(combine_weights(w_attn, w_v))  # (d_in, S)

    # --- small-batch path (single VMEM block) ---
    attn_input = jax.random.normal(k_x, (batch, d_in), jnp.float32)
    out = jax.block_until_ready(soft_attention(attn_input, w_combined))
    ref = reference_soft_attention(attn_input, w_attn, w_v)
    assert out.shape == (batch, sequence_length)
    assert jnp.allclose(out, ref, atol=1e-4, rtol=1e-4)
    assert jnp.allclose(jnp.sum(out, axis=1), jnp.ones((batch,)), atol=1e-5)

    # --- gridded path: pipelined, parallel batch axis, non-divisible B ---
    big_batch = 2100  # 3 grid steps at tile_b=1024; last tile is partial (52 rows)
    attn_input_big = jax.random.normal(k_xl, (big_batch, d_in), jnp.float32)
    out_big = jax.block_until_ready(
        soft_attention(attn_input_big, w_combined, tile_b=1024))
    ref_big = reference_soft_attention(attn_input_big, w_attn, w_v)
    assert out_big.shape == (big_batch, sequence_length)
    assert jnp.allclose(out_big, ref_big, atol=1e-4, rtol=1e-4)
    assert jnp.allclose(jnp.sum(out_big, axis=1), jnp.ones((big_batch,)), atol=1e-5)

    print("KERNEL_OK")
</pallas_src>

<mosaic_0001>
module attributes {stable_mosaic.version = 11 : i64} {
  func.func @soft_attention_kernel(%arg0: memref<2x64xf32, #tpu.memory_space<vmem>>, %arg1: memref<64x8xf32, #tpu.memory_space<vmem>>, %arg2: memref<2x8xf32, #tpu.memory_space<vmem>>) attributes {dimension_semantics = [], scalar_prefetch = 0 : i64, scratch_operands = 0 : i64, tpu.core_type = #tpu.core_type<tc>} {
    %c0 = arith.constant 0 : index
    %c0_0 = arith.constant 0 : index
    %0 = vector.load %arg0[%c0, %c0_0] : memref<2x64xf32, #tpu.memory_space<vmem>>, vector<2x64xf32>
    %c0_1 = arith.constant 0 : index
    %c0_2 = arith.constant 0 : index
    %1 = vector.load %arg1[%c0_1, %c0_2] : memref<64x8xf32, #tpu.memory_space<vmem>>, vector<64x8xf32>
    %cst = arith.constant dense<0.000000e+00> : vector<2x8xf32>
    %2 = tpu.matmul %0, %1, %cst {dimension_numbers = #tpu.dot_dimension_numbers<[1], [0], [0], [1], [0, 0, 1, 1], [], []>} : vector<2x64xf32>, vector<64x8xf32>, vector<2x8xf32> -> vector<2x8xf32>
    %cst_3 = arith.constant dense<0xFF800000> : vector<2xf32>
    %3 = vector.multi_reduction <maximumf>, %2, %cst_3 [1] : vector<2x8xf32> to vector<2xf32>
    %4 = vector.shape_cast %3 : vector<2xf32> to vector<2x1xf32>
    %5 = vector.broadcast %4 : vector<2x1xf32> to vector<2x8xf32>
    %6 = arith.subf %2, %5 : vector<2x8xf32>
    %7 = math.exp %6 : vector<2x8xf32>
    %cst_4 = arith.constant dense<0.000000e+00> : vector<2xf32>
    %8 = vector.multi_reduction <add>, %7, %cst_4 [1] : vector<2x8xf32> to vector<2xf32>
    %9 = vector.shape_cast %8 : vector<2xf32> to vector<2x1xf32>
    %10 = vector.broadcast %9 : vector<2x1xf32> to vector<2x8xf32>
    %11 = arith.divf %7, %10 : vector<2x8xf32>
    %c0_5 = arith.constant 0 : index
    %c0_6 = arith.constant 0 : index
    %12 = vector.load %arg2[%c0_5, %c0_6] : memref<2x8xf32, #tpu.memory_space<vmem>>, vector<2x8xf32>
    tpu.vector_store %arg2[%c0_5, %c0_6], %11 {strides = array<i32>} : memref<2x8xf32, #tpu.memory_space<vmem>>, vector<2x8xf32>,
    return
  }
}

</mosaic_0001>

<llo_original>
// kernel: soft_attention.1
$region0: #{soft_attention.1}
  #allocation0 [shape = 'u32[]', space=smem, size = 0x4, offset = 0x4, fixed_abs, tag = 'smem constant byte address 0x4 - core index']
  #allocation1 [shape = 'u32[72,128]{1,0:T(1,128)}', space=vmem, size = 0x9000, scoped, tag = 'internal scratch']
  %s0 = inlined_call_operand.vmem [shape: f32[2,64], index: 0, kind: input, shape index: {}]
  %s1 = inlined_call_operand.vmem [shape: f32[64,8], index: 1, kind: input, shape index: {}]
  %s2 = inlined_call_operand.hbm [shape: f32[2,8], index: 2, kind: output, shape index: {}]
  %s3 = sld [smem:[#allocation0]]
  $region18: #{soft_attention.1} parent=0
    _
  %s5 = ssub.s32 1, %s3
  %s6 = scalar_select 0, %s5, %s3
  $region1: #{soft_attention.1} parent=0
    #allocation2 [shape = 'u8[1024]{0}', space=vmem, size = 0x400, scoped, tag = 'output window, operand 0, single buffered']
    #allocation3 [shape = 's32[1]{0}', space=sflag, size = 0x4, scoped, tag = 'scoped memory for soft_attention.1']
    %7 = vsyncpa [#allocation3], 0
    // Predicated region
    $region2: #{soft_attention.1} parent=1 // pred_check
      _
    $region3: #{soft_attention.1} parent=1 // pred_check_branch
      %9 = sbr.rel (0) target = $region5
    $region4: #{soft_attention.1} parent=1 // pred_region
      _
    $region5: #{soft_attention.1} parent=1 // pred_fallthru
      _
    // Predicated region
    $region6: #{soft_attention.1} parent=1 // pred_check
      _
    $region7: #{soft_attention.1} parent=1 // pred_check_branch
      %11 = sbr.rel (0) target = $region9
    $region8: #{soft_attention.1} parent=1 // pred_region
      _
    $region9: #{soft_attention.1} parent=1 // pred_fallthru
      _
    %v12 = vld [vmem:[%s0] sm:$0x3]
    %v13 = vld [vmem:[%s1] sm:$0xff]
    %v14 = vld [vmem:[%s1 + $0x8] sm:$0xff]
    %v15 = vld [vmem:[%s1 + $0x10] sm:$0xff]
    %v16 = vld [vmem:[%s1 + $0x18] sm:$0xff]
    %v17 = vld [vmem:[%s1 + $0x20] sm:$0xff]
    %v18 = vld [vmem:[%s1 + $0x28] sm:$0xff]
    %v19 = vld [vmem:[%s1 + $0x30] sm:$0xff]
    %v20 = vld [vmem:[%s1 + $0x38] sm:$0xff]
    %vm21 = vcmask 523264
    %v23 = vsel %vm21, %v12, 0
    %25 = vmatpush.msra.mxu0 0.0
    %26 = vmatpush.msra.mxu0 0.0
    %27 = vmatpush.msra.mxu0 0.0
    %28 = vmatpush.msra.mxu0 0.0
    %29 = vmatpush.msra.mxu0 0.0
    %30 = vmatpush.msra.mxu0 0.0
    %31 = vmatpush.msra.mxu0 0.0
    %32 = vmatpush.msra.mxu0 0.0
    %33 = vmatpush.msra.mxu0 %v20
    %34 = vmatpush.msra.mxu0 %v19
    %35 = vmatpush.msra.mxu0 %v18
    %36 = vmatpush.msra.mxu0 %v17
    %37 = vmatpush.msra.mxu0 %v16
    %38 = vmatpush.msra.mxu0 %v15
    %39 = vmatpush.msra.mxu0 %v14
    %40 = vmatpush.msra.mxu0 %v13
    %41 = vmatmul.f32.gmra.mxu0 %v23
    %v42 = vpop.f32.mrf.mxu0
    %v43 = vadd.f32 0.0, %v42
    %44 = vdwg.mxu0
    %vm45 = vcmask 58368
    %v46 = vsel %vm45, %v43, -inf
    %47 = vmax.xlane.f32.xlu0 %v46
    %v48 = vpop.xlane.xlu0 %47
    %v49 = vsub.f32 %v43, %v48
    %v50 = vmul.f32 %v49, 1.442695
    %v51 = vpow.pop %v50
    %v52 = vsel %vm45, %v51, 0.0
    %53 = vadd.xlane.f32.xlu0 %v52
    %v54 = vpop.xlane.xlu0 %53
    %v55 = vrcp.pop %v54
    %v56 = vmul.f32 %v54, %v55
    %v57 = vsub.f32 1.0, %v56
    %v58 = vmul.f32 %v55, %v57
    %v59 = vadd.f32 %v55, %v58
    %vm60 = vweird.f32 %v54
    %vm61 = vweird.f32 %v55
    %vm62 = vmor %vm60, %vm61
    %v63 = vsel %vm62, %v55, %v59
    %v64 = vand.u32 2147483647, %v54
    %vm65 = vcmp.eq.f32.partialorder %v64, 8.507059e+37
    %v66 = vand.u32 %v54, 2147483648
    %v67 = vor.u32 1.1754944e-38, %v66
    %v68 = vsel %vm65, %v67, %v63
    %v69 = vmul.f32 %v51, %v68
    %70 = vst.msk [vmem:[#allocation2] sm:$0x3] %vm45, %v69
    // Predicated region
    $region10: #{soft_attention.1} parent=1 // pred_check
      _
    $region11: #{soft_attention.1} parent=1 // pred_check_branch
      %72 = sbr.rel (0) target = $region13
    $region12: #{soft_attention.1} parent=1 // pred_region
      %74 = vsyncadd [#allocation3], 0
      %s76 = sshll.u32 [#allocation2], 4
      %s77 = int_to_ptr.vmem [resolvable:$true] %s76
      %s78 = sshll.u32 %s2, 4
      %s79 = int_to_ptr.hbm [resolvable:$true] %s78
      %81 = dma.vmem_to_hbm [thread:$0]  %s77, 32, %s79, [#allocation3]
    $region13: #{soft_attention.1} parent=1 // pred_fallthru
      _
    // Predicated region
    $region14: #{soft_attention.1} parent=1 // pred_check
      _
    $region15: #{soft_attention.1} parent=1 // pred_check_branch
      %83 = sbr.rel (0) target = $region17
    $region16: #{soft_attention.1} parent=1 // pred_region
      %85 = dma.done [#allocation3], 32
    $region17: #{soft_attention.1} parent=1 // pred_fallthru
      _
    %86 = vsyncpa [#allocation3], 1

</llo_original>
